<compile_context>
chip_gen: v6e
topology: v6e:2x2x1
jax: 0.10.0
libtpu: 0.0.40
codegen_flags: <defaults>
</compile_context>

<pallas_src>
import numpy as np
import jax
import jax.numpy as jnp
from jax.experimental import pallas as pl
from jax.experimental.pallas import tpu as pltpu

# ----------------------------------------------------------------------------
# Deterministic "parameters" taken verbatim from TSP8.__init__
# ----------------------------------------------------------------------------
N_CITIES = 8
BT = 128  # tours per grid step: one full lane dimension

CITIES = ["A", "B", "C", "D", "E", "F", "G", "H"]
CITY_IDX = {c: i for i, c in enumerate(CITIES)}

CITY_POSITIONS = np.array(
    [
        [1.0, 0.0, 0.0],  # A
        [0.0, 1.0, 0.0],  # B
        [0.0, 0.0, 1.0],  # C
        [1.0, 1.0, 0.0],  # D
        [0.0, 1.0, 1.0],  # E
        [1.0, 0.0, 1.0],  # F
        [1.0, 1.0, 1.0],  # G
        [0.0, 0.0, 0.0],  # H
    ],
    dtype=np.float64,
)

WEIGHTS_DICT = {
    ('A', 'B'): 2.0, ('B', 'A'): 1.0, ('A', 'C'): 1.5, ('C', 'A'): 1.8,
    ('A', 'D'): 1.2, ('D', 'A'): 1.7, ('B', 'C'): 2.5, ('C', 'B'): 2.2,
    ('B', 'D'): 2.0, ('D', 'B'): 1.3, ('C', 'D'): 1.6, ('D', 'C'): 1.9,
    ('A', 'E'): 2.1, ('E', 'A'): 1.9, ('A', 'F'): 2.3, ('F', 'A'): 1.5,
    ('A', 'G'): 2.2, ('G', 'A'): 1.6, ('A', 'H'): 2.4, ('H', 'A'): 1.8,
    ('B', 'E'): 2.6, ('E', 'B'): 2.1, ('B', 'F'): 2.5, ('F', 'B'): 1.9,
    ('B', 'G'): 2.8, ('G', 'B'): 1.7, ('B', 'H'): 2.9, ('H', 'B'): 1.5,
    ('C', 'E'): 1.4, ('E', 'C'): 1.8, ('C', 'F'): 1.6, ('F', 'C'): 1.7,
    ('C', 'G'): 1.5, ('G', 'C'): 1.6, ('C', 'H'): 1.7, ('H', 'C'): 1.9,
    ('D', 'E'): 2.4, ('E', 'D'): 1.5, ('D', 'F'): 2.3, ('F', 'D'): 1.7,
    ('D', 'G'): 2.2, ('G', 'D'): 1.8, ('D', 'H'): 2.6, ('H', 'D'): 2.0,
    ('E', 'F'): 2.5, ('F', 'E'): 1.4, ('E', 'G'): 2.8, ('G', 'E'): 1.5,
    ('E', 'H'): 2.6, ('H', 'E'): 1.6, ('F', 'G'): 2.2, ('G', 'F'): 1.4,
    ('F', 'H'): 2.3, ('H', 'F'): 1.5, ('G', 'H'): 2.5, ('H', 'G'): 1.7,
}

WEIGHT_MATRIX = np.zeros((N_CITIES, N_CITIES), dtype=np.float64)
for (c1, c2), w in WEIGHTS_DICT.items():
    WEIGHT_MATRIX[CITY_IDX[c1], CITY_IDX[c2]] = w


# ----------------------------------------------------------------------------
# Pallas kernel: VPU-only gathers, batch in lanes, edges in sublanes
# ----------------------------------------------------------------------------
def tsp_cost_kernel(perm_ref, out_ref):
    # perm_ref : VMEM (8, BT) int32 -- perm_ref[i, b] = i-th city of tour b
    # out_ref  : VMEM (1, BT) f32   -- negative weighted tour length per tour
    src = perm_ref[...]                          # (8, BT) edge sources
    dst = jnp.roll(src, shift=-1, axis=0)        # dst[i] = src[(i+1) % 8]

    one = jnp.float32(1.0)
    zero = jnp.float32(0.0)

    # Broadcast-compare one-hot masks per city (static unroll over 8 cities).
    ms = [jnp.where(src == c, one, zero) for c in range(N_CITIES)]
    md = [jnp.where(dst == c, one, zero) for c in range(N_CITIES)]
    diff = [ms[c] - md[c] for c in range(N_CITIES)]

    zeros = jnp.zeros_like(ms[0])

    # Coordinate differences via linearity: d_k = sum_c (ms[c]-md[c]) * pos[c,k].
    dxyz = []
    for k in range(3):
        acc = zeros
        for c in range(N_CITIES):
            p = float(CITY_POSITIONS[c, k])
            if p != 0.0:
                acc = acc + diff[c] * jnp.float32(p)
        dxyz.append(acc)
    dist = jnp.sqrt(dxyz[0] * dxyz[0] + dxyz[1] * dxyz[1] + dxyz[2] * dxyz[2])

    # Directed edge weight: w = sum_{c2} md[c2] * (sum_{c1} ms[c1] * W[c1, c2]).
    w = zeros
    for c2 in range(N_CITIES):
        col = zeros
        for c1 in range(N_CITIES):
            wv = float(WEIGHT_MATRIX[c1, c2])
            if wv != 0.0:
                col = col + ms[c1] * jnp.float32(wv)
        w = w + md[c2] * col

    # Per-tour total weighted length (sum over the 8 edges, sublane reduce).
    out_ref[...] = -jnp.sum(w * dist, axis=0, keepdims=True)


# ----------------------------------------------------------------------------
# Wrappers
# ----------------------------------------------------------------------------
def tsp8_forward_batch(perms):
    """perms: (B, 8) int32, each row a permutation of city indices 0..7.

    Returns (B,) float32: -total weighted tour length per tour (TSP8.forward).
    """
    B = perms.shape[0]
    assert B % BT == 0, "batch must be a multiple of 128"
    perms_t = jnp.transpose(perms.astype(jnp.int32))      # (8, B) lane-major batch
    out = pl.pallas_call(
        tsp_cost_kernel,
        out_shape=jax.ShapeDtypeStruct((1, B), jnp.float32),
        grid=(B // BT,),
        in_specs=[pl.BlockSpec((N_CITIES, BT), lambda j: (0, j))],
        out_specs=pl.BlockSpec((1, BT), lambda j: (0, j)),
        compiler_params=pltpu.CompilerParams(
            dimension_semantics=("parallel",)),
    )(perms_t)
    return out[0]


def tsp8_forward(perm_idx):
    """Single-tour API matching TSP8.forward (perm_idx: (8,) int indices)."""
    perms = jnp.tile(jnp.asarray(perm_idx, jnp.int32)[None, :], (BT, 1))
    return tsp8_forward_batch(perms)[0]


# Pure-numpy reference mirroring TSP8.forward for verification.
def reference_forward(perm_indices):
    total = 0.0
    n = len(perm_indices)
    for i in range(n):
        c1 = int(perm_indices[i])
        c2 = int(perm_indices[(i + 1) % n])
        d = np.linalg.norm(CITY_POSITIONS[c1] - CITY_POSITIONS[c2])
        total += WEIGHT_MATRIX[c1, c2] * d
    return -total


if __name__ == "__main__":
    B = 256
    key = jax.random.PRNGKey(0)
    keys = jax.random.split(key, B)
    perms = jax.vmap(lambda k: jax.random.permutation(k, N_CITIES))(keys)
    perms = perms.astype(jnp.int32)                        # (B, 8) tours

    result = jax.block_until_ready(tsp8_forward_batch(perms))   # (B,)

    perms_np = np.asarray(perms)
    ref = np.array([reference_forward(perms_np[b]) for b in range(B)])
    err = np.max(np.abs(np.asarray(result) - ref))
    assert np.allclose(np.asarray(result), ref, rtol=1e-5, atol=1e-4), err

    # Single-tour path (module-equivalent signature).
    single = jax.block_until_ready(tsp8_forward(perms[0]))
    assert np.allclose(float(single), ref[0], rtol=1e-5, atol=1e-4)

    print("KERNEL_OK")
</pallas_src>

<mosaic_0001>
module attributes {stable_mosaic.version = 11 : i64} {
  func.func @tsp_cost_kernel(%arg0: i32, %arg1: memref<8x128xi32, #tpu.memory_space<vmem>>, %arg2: memref<1x128xf32, #tpu.memory_space<vmem>>) attributes {dimension_semantics = [#tpu.dimension_semantics<parallel>], iteration_bounds = array<i64: 2>, scalar_prefetch = 0 : i64, scratch_operands = 0 : i64, tpu.core_type = #tpu.core_type<tc>, window_params = [{transform_indices = @transform_0, window_bounds = array<i64: 8, 128>}, {transform_indices = @transform_1, window_bounds = array<i64: 1, 128>}]} {
    %c0 = arith.constant 0 : index
    %c0_0 = arith.constant 0 : index
    %0 = vector.load %arg1[%c0, %c0_0] : memref<8x128xi32, #tpu.memory_space<vmem>>, vector<8x128xi32>
    %1 = vector.extract_strided_slice %0 {offsets = [1, 0], sizes = [7, 128], strides = [1, 1]} : vector<8x128xi32> to vector<7x128xi32>
    %2 = vector.extract_strided_slice %0 {offsets = [0, 0], sizes = [1, 128], strides = [1, 1]} : vector<8x128xi32> to vector<1x128xi32>
    %3 = tpu.concatenate %1, %2 in 0 : vector<7x128xi32>, vector<1x128xi32> -> vector<8x128xi32>
    %c0_i32 = arith.constant 0 : i32
    %4 = vector.broadcast %c0_i32 : i32 to vector<8x128xi32>
    %5 = arith.cmpi eq, %0, %4 : vector<8x128xi32>
    %cst = arith.constant 1.000000e+00 : f32
    %cst_1 = arith.constant 0.000000e+00 : f32
    %6 = vector.broadcast %cst : f32 to vector<8x128xf32>
    %7 = vector.broadcast %cst_1 : f32 to vector<8x128xf32>
    %8 = arith.select %5, %6, %7 : vector<8x128xi1>, vector<8x128xf32>
    %c1_i32 = arith.constant 1 : i32
    %9 = vector.broadcast %c1_i32 : i32 to vector<8x128xi32>
    %10 = arith.cmpi eq, %0, %9 : vector<8x128xi32>
    %cst_2 = arith.constant 1.000000e+00 : f32
    %cst_3 = arith.constant 0.000000e+00 : f32
    %11 = vector.broadcast %cst_2 : f32 to vector<8x128xf32>
    %12 = vector.broadcast %cst_3 : f32 to vector<8x128xf32>
    %13 = arith.select %10, %11, %12 : vector<8x128xi1>, vector<8x128xf32>
    %c2_i32 = arith.constant 2 : i32
    %14 = vector.broadcast %c2_i32 : i32 to vector<8x128xi32>
    %15 = arith.cmpi eq, %0, %14 : vector<8x128xi32>
    %cst_4 = arith.constant 1.000000e+00 : f32
    %cst_5 = arith.constant 0.000000e+00 : f32
    %16 = vector.broadcast %cst_4 : f32 to vector<8x128xf32>
    %17 = vector.broadcast %cst_5 : f32 to vector<8x128xf32>
    %18 = arith.select %15, %16, %17 : vector<8x128xi1>, vector<8x128xf32>
    %c3_i32 = arith.constant 3 : i32
    %19 = vector.broadcast %c3_i32 : i32 to vector<8x128xi32>
    %20 = arith.cmpi eq, %0, %19 : vector<8x128xi32>
    %cst_6 = arith.constant 1.000000e+00 : f32
    %cst_7 = arith.constant 0.000000e+00 : f32
    %21 = vector.broadcast %cst_6 : f32 to vector<8x128xf32>
    %22 = vector.broadcast %cst_7 : f32 to vector<8x128xf32>
    %23 = arith.select %20, %21, %22 : vector<8x128xi1>, vector<8x128xf32>
    %c4_i32 = arith.constant 4 : i32
    %24 = vector.broadcast %c4_i32 : i32 to vector<8x128xi32>
    %25 = arith.cmpi eq, %0, %24 : vector<8x128xi32>
    %cst_8 = arith.constant 1.000000e+00 : f32
    %cst_9 = arith.constant 0.000000e+00 : f32
    %26 = vector.broadcast %cst_8 : f32 to vector<8x128xf32>
    %27 = vector.broadcast %cst_9 : f32 to vector<8x128xf32>
    %28 = arith.select %25, %26, %27 : vector<8x128xi1>, vector<8x128xf32>
    %c5_i32 = arith.constant 5 : i32
    %29 = vector.broadcast %c5_i32 : i32 to vector<8x128xi32>
    %30 = arith.cmpi eq, %0, %29 : vector<8x128xi32>
    %cst_10 = arith.constant 1.000000e+00 : f32
    %cst_11 = arith.constant 0.000000e+00 : f32
    %31 = vector.broadcast %cst_10 : f32 to vector<8x128xf32>
    %32 = vector.broadcast %cst_11 : f32 to vector<8x128xf32>
    %33 = arith.select %30, %31, %32 : vector<8x128xi1>, vector<8x128xf32>
    %c6_i32 = arith.constant 6 : i32
    %34 = vector.broadcast %c6_i32 : i32 to vector<8x128xi32>
    %35 = arith.cmpi eq, %0, %34 : vector<8x128xi32>
    %cst_12 = arith.constant 1.000000e+00 : f32
    %cst_13 = arith.constant 0.000000e+00 : f32
    %36 = vector.broadcast %cst_12 : f32 to vector<8x128xf32>
    %37 = vector.broadcast %cst_13 : f32 to vector<8x128xf32>
    %38 = arith.select %35, %36, %37 : vector<8x128xi1>, vector<8x128xf32>
    %c7_i32 = arith.constant 7 : i32
    %39 = vector.broadcast %c7_i32 : i32 to vector<8x128xi32>
    %40 = arith.cmpi eq, %0, %39 : vector<8x128xi32>
    %cst_14 = arith.constant 1.000000e+00 : f32
    %cst_15 = arith.constant 0.000000e+00 : f32
    %41 = vector.broadcast %cst_14 : f32 to vector<8x128xf32>
    %42 = vector.broadcast %cst_15 : f32 to vector<8x128xf32>
    %43 = arith.select %40, %41, %42 : vector<8x128xi1>, vector<8x128xf32>
    %c0_i32_16 = arith.constant 0 : i32
    %44 = vector.broadcast %c0_i32_16 : i32 to vector<8x128xi32>
    %45 = arith.cmpi eq, %3, %44 : vector<8x128xi32>
    %cst_17 = arith.constant 1.000000e+00 : f32
    %cst_18 = arith.constant 0.000000e+00 : f32
    %46 = vector.broadcast %cst_17 : f32 to vector<8x128xf32>
    %47 = vector.broadcast %cst_18 : f32 to vector<8x128xf32>
    %48 = arith.select %45, %46, %47 : vector<8x128xi1>, vector<8x128xf32>
    %c1_i32_19 = arith.constant 1 : i32
    %49 = vector.broadcast %c1_i32_19 : i32 to vector<8x128xi32>
    %50 = arith.cmpi eq, %3, %49 : vector<8x128xi32>
    %cst_20 = arith.constant 1.000000e+00 : f32
    %cst_21 = arith.constant 0.000000e+00 : f32
    %51 = vector.broadcast %cst_20 : f32 to vector<8x128xf32>
    %52 = vector.broadcast %cst_21 : f32 to vector<8x128xf32>
    %53 = arith.select %50, %51, %52 : vector<8x128xi1>, vector<8x128xf32>
    %c2_i32_22 = arith.constant 2 : i32
    %54 = vector.broadcast %c2_i32_22 : i32 to vector<8x128xi32>
    %55 = arith.cmpi eq, %3, %54 : vector<8x128xi32>
    %cst_23 = arith.constant 1.000000e+00 : f32
    %cst_24 = arith.constant 0.000000e+00 : f32
    %56 = vector.broadcast %cst_23 : f32 to vector<8x128xf32>
    %57 = vector.broadcast %cst_24 : f32 to vector<8x128xf32>
    %58 = arith.select %55, %56, %57 : vector<8x128xi1>, vector<8x128xf32>
    %c3_i32_25 = arith.constant 3 : i32
    %59 = vector.broadcast %c3_i32_25 : i32 to vector<8x128xi32>
    %60 = arith.cmpi eq, %3, %59 : vector<8x128xi32>
    %cst_26 = arith.constant 1.000000e+00 : f32
    %cst_27 = arith.constant 0.000000e+00 : f32
    %61 = vector.broadcast %cst_26 : f32 to vector<8x128xf32>
    %62 = vector.broadcast %cst_27 : f32 to vector<8x128xf32>
    %63 = arith.select %60, %61, %62 : vector<8x128xi1>, vector<8x128xf32>
    %c4_i32_28 = arith.constant 4 : i32
    %64 = vector.broadcast %c4_i32_28 : i32 to vector<8x128xi32>
    %65 = arith.cmpi eq, %3, %64 : vector<8x128xi32>
    %cst_29 = arith.constant 1.000000e+00 : f32
    %cst_30 = arith.constant 0.000000e+00 : f32
    %66 = vector.broadcast %cst_29 : f32 to vector<8x128xf32>
    %67 = vector.broadcast %cst_30 : f32 to vector<8x128xf32>
    %68 = arith.select %65, %66, %67 : vector<8x128xi1>, vector<8x128xf32>
    %c5_i32_31 = arith.constant 5 : i32
    %69 = vector.broadcast %c5_i32_31 : i32 to vector<8x128xi32>
    %70 = arith.cmpi eq, %3, %69 : vector<8x128xi32>
    %cst_32 = arith.constant 1.000000e+00 : f32
    %cst_33 = arith.constant 0.000000e+00 : f32
    %71 = vector.broadcast %cst_32 : f32 to vector<8x128xf32>
    %72 = vector.broadcast %cst_33 : f32 to vector<8x128xf32>
    %73 = arith.select %70, %71, %72 : vector<8x128xi1>, vector<8x128xf32>
    %c6_i32_34 = arith.constant 6 : i32
    %74 = vector.broadcast %c6_i32_34 : i32 to vector<8x128xi32>
    %75 = arith.cmpi eq, %3, %74 : vector<8x128xi32>
    %cst_35 = arith.constant 1.000000e+00 : f32
    %cst_36 = arith.constant 0.000000e+00 : f32
    %76 = vector.broadcast %cst_35 : f32 to vector<8x128xf32>
    %77 = vector.broadcast %cst_36 : f32 to vector<8x128xf32>
    %78 = arith.select %75, %76, %77 : vector<8x128xi1>, vector<8x128xf32>
    %c7_i32_37 = arith.constant 7 : i32
    %79 = vector.broadcast %c7_i32_37 : i32 to vector<8x128xi32>
    %80 = arith.cmpi eq, %3, %79 : vector<8x128xi32>
    %cst_38 = arith.constant 1.000000e+00 : f32
    %cst_39 = arith.constant 0.000000e+00 : f32
    %81 = vector.broadcast %cst_38 : f32 to vector<8x128xf32>
    %82 = vector.broadcast %cst_39 : f32 to vector<8x128xf32>
    %83 = arith.select %80, %81, %82 : vector<8x128xi1>, vector<8x128xf32>
    %84 = arith.subf %8, %48 : vector<8x128xf32>
    %85 = arith.subf %13, %53 : vector<8x128xf32>
    %86 = arith.subf %18, %58 : vector<8x128xf32>
    %87 = arith.subf %23, %63 : vector<8x128xf32>
    %88 = arith.subf %28, %68 : vector<8x128xf32>
    %89 = arith.subf %33, %73 : vector<8x128xf32>
    %90 = arith.subf %38, %78 : vector<8x128xf32>
    %cst_40 = arith.constant 0.000000e+00 : f32
    %91 = vector.broadcast %cst_40 : f32 to vector<8x128xf32>
    %cst_41 = arith.constant 1.000000e+00 : f32
    %92 = vector.broadcast %cst_41 : f32 to vector<8x128xf32>
    %93 = arith.mulf %84, %92 : vector<8x128xf32>
    %94 = arith.addf %91, %93 : vector<8x128xf32>
    %cst_42 = arith.constant 1.000000e+00 : f32
    %95 = vector.broadcast %cst_42 : f32 to vector<8x128xf32>
    %96 = arith.mulf %87, %95 : vector<8x128xf32>
    %97 = arith.addf %94, %96 : vector<8x128xf32>
    %cst_43 = arith.constant 1.000000e+00 : f32
    %98 = vector.broadcast %cst_43 : f32 to vector<8x128xf32>
    %99 = arith.mulf %89, %98 : vector<8x128xf32>
    %100 = arith.addf %97, %99 : vector<8x128xf32>
    %cst_44 = arith.constant 1.000000e+00 : f32
    %101 = vector.broadcast %cst_44 : f32 to vector<8x128xf32>
    %102 = arith.mulf %90, %101 : vector<8x128xf32>
    %103 = arith.addf %100, %102 : vector<8x128xf32>
    %cst_45 = arith.constant 1.000000e+00 : f32
    %104 = vector.broadcast %cst_45 : f32 to vector<8x128xf32>
    %105 = arith.mulf %85, %104 : vector<8x128xf32>
    %106 = arith.addf %91, %105 : vector<8x128xf32>
    %cst_46 = arith.constant 1.000000e+00 : f32
    %107 = vector.broadcast %cst_46 : f32 to vector<8x128xf32>
    %108 = arith.mulf %87, %107 : vector<8x128xf32>
    %109 = arith.addf %106, %108 : vector<8x128xf32>
    %cst_47 = arith.constant 1.000000e+00 : f32
    %110 = vector.broadcast %cst_47 : f32 to vector<8x128xf32>
    %111 = arith.mulf %88, %110 : vector<8x128xf32>
    %112 = arith.addf %109, %111 : vector<8x128xf32>
    %cst_48 = arith.constant 1.000000e+00 : f32
    %113 = vector.broadcast %cst_48 : f32 to vector<8x128xf32>
    %114 = arith.mulf %90, %113 : vector<8x128xf32>
    %115 = arith.addf %112, %114 : vector<8x128xf32>
    %cst_49 = arith.constant 1.000000e+00 : f32
    %116 = vector.broadcast %cst_49 : f32 to vector<8x128xf32>
    %117 = arith.mulf %86, %116 : vector<8x128xf32>
    %118 = arith.addf %91, %117 : vector<8x128xf32>
    %cst_50 = arith.constant 1.000000e+00 : f32
    %119 = vector.broadcast %cst_50 : f32 to vector<8x128xf32>
    %120 = arith.mulf %88, %119 : vector<8x128xf32>
    %121 = arith.addf %118, %120 : vector<8x128xf32>
    %cst_51 = arith.constant 1.000000e+00 : f32
    %122 = vector.broadcast %cst_51 : f32 to vector<8x128xf32>
    %123 = arith.mulf %89, %122 : vector<8x128xf32>
    %124 = arith.addf %121, %123 : vector<8x128xf32>
    %cst_52 = arith.constant 1.000000e+00 : f32
    %125 = vector.broadcast %cst_52 : f32 to vector<8x128xf32>
    %126 = arith.mulf %90, %125 : vector<8x128xf32>
    %127 = arith.addf %124, %126 : vector<8x128xf32>
    %128 = arith.mulf %103, %103 : vector<8x128xf32>
    %129 = arith.mulf %115, %115 : vector<8x128xf32>
    %130 = arith.addf %128, %129 : vector<8x128xf32>
    %131 = arith.mulf %127, %127 : vector<8x128xf32>
    %132 = arith.addf %130, %131 : vector<8x128xf32>
    %133 = math.sqrt %132 : vector<8x128xf32>
    %cst_53 = arith.constant 1.000000e+00 : f32
    %134 = vector.broadcast %cst_53 : f32 to vector<8x128xf32>
    %135 = arith.mulf %13, %134 : vector<8x128xf32>
    %136 = arith.addf %91, %135 : vector<8x128xf32>
    %cst_54 = arith.constant 1.800000e+00 : f32
    %137 = vector.broadcast %cst_54 : f32 to vector<8x128xf32>
    %138 = arith.mulf %18, %137 : vector<8x128xf32>
    %139 = arith.addf %136, %138 : vector<8x128xf32>
    %cst_55 = arith.constant 1.700000e+00 : f32
    %140 = vector.broadcast %cst_55 : f32 to vector<8x128xf32>
    %141 = arith.mulf %23, %140 : vector<8x128xf32>
    %142 = arith.addf %139, %141 : vector<8x128xf32>
    %cst_56 = arith.constant 1.900000e+00 : f32
    %143 = vector.broadcast %cst_56 : f32 to vector<8x128xf32>
    %144 = arith.mulf %28, %143 : vector<8x128xf32>
    %145 = arith.addf %142, %144 : vector<8x128xf32>
    %cst_57 = arith.constant 1.500000e+00 : f32
    %146 = vector.broadcast %cst_57 : f32 to vector<8x128xf32>
    %147 = arith.mulf %33, %146 : vector<8x128xf32>
    %148 = arith.addf %145, %147 : vector<8x128xf32>
    %cst_58 = arith.constant 1.600000e+00 : f32
    %149 = vector.broadcast %cst_58 : f32 to vector<8x128xf32>
    %150 = arith.mulf %38, %149 : vector<8x128xf32>
    %151 = arith.addf %148, %150 : vector<8x128xf32>
    %cst_59 = arith.constant 1.800000e+00 : f32
    %152 = vector.broadcast %cst_59 : f32 to vector<8x128xf32>
    %153 = arith.mulf %43, %152 : vector<8x128xf32>
    %154 = arith.addf %151, %153 : vector<8x128xf32>
    %155 = arith.mulf %48, %154 : vector<8x128xf32>
    %156 = arith.addf %91, %155 : vector<8x128xf32>
    %cst_60 = arith.constant 2.000000e+00 : f32
    %157 = vector.broadcast %cst_60 : f32 to vector<8x128xf32>
    %158 = arith.mulf %8, %157 : vector<8x128xf32>
    %159 = arith.addf %91, %158 : vector<8x128xf32>
    %cst_61 = arith.constant 2.200000e+00 : f32
    %160 = vector.broadcast %cst_61 : f32 to vector<8x128xf32>
    %161 = arith.mulf %18, %160 : vector<8x128xf32>
    %162 = arith.addf %159, %161 : vector<8x128xf32>
    %cst_62 = arith.constant 1.300000e+00 : f32
    %163 = vector.broadcast %cst_62 : f32 to vector<8x128xf32>
    %164 = arith.mulf %23, %163 : vector<8x128xf32>
    %165 = arith.addf %162, %164 : vector<8x128xf32>
    %cst_63 = arith.constant 2.100000e+00 : f32
    %166 = vector.broadcast %cst_63 : f32 to vector<8x128xf32>
    %167 = arith.mulf %28, %166 : vector<8x128xf32>
    %168 = arith.addf %165, %167 : vector<8x128xf32>
    %cst_64 = arith.constant 1.900000e+00 : f32
    %169 = vector.broadcast %cst_64 : f32 to vector<8x128xf32>
    %170 = arith.mulf %33, %169 : vector<8x128xf32>
    %171 = arith.addf %168, %170 : vector<8x128xf32>
    %cst_65 = arith.constant 1.700000e+00 : f32
    %172 = vector.broadcast %cst_65 : f32 to vector<8x128xf32>
    %173 = arith.mulf %38, %172 : vector<8x128xf32>
    %174 = arith.addf %171, %173 : vector<8x128xf32>
    %cst_66 = arith.constant 1.500000e+00 : f32
    %175 = vector.broadcast %cst_66 : f32 to vector<8x128xf32>
    %176 = arith.mulf %43, %175 : vector<8x128xf32>
    %177 = arith.addf %174, %176 : vector<8x128xf32>
    %178 = arith.mulf %53, %177 : vector<8x128xf32>
    %179 = arith.addf %156, %178 : vector<8x128xf32>
    %cst_67 = arith.constant 1.500000e+00 : f32
    %180 = vector.broadcast %cst_67 : f32 to vector<8x128xf32>
    %181 = arith.mulf %8, %180 : vector<8x128xf32>
    %182 = arith.addf %91, %181 : vector<8x128xf32>
    %cst_68 = arith.constant 2.500000e+00 : f32
    %183 = vector.broadcast %cst_68 : f32 to vector<8x128xf32>
    %184 = arith.mulf %13, %183 : vector<8x128xf32>
    %185 = arith.addf %182, %184 : vector<8x128xf32>
    %cst_69 = arith.constant 1.900000e+00 : f32
    %186 = vector.broadcast %cst_69 : f32 to vector<8x128xf32>
    %187 = arith.mulf %23, %186 : vector<8x128xf32>
    %188 = arith.addf %185, %187 : vector<8x128xf32>
    %cst_70 = arith.constant 1.800000e+00 : f32
    %189 = vector.broadcast %cst_70 : f32 to vector<8x128xf32>
    %190 = arith.mulf %28, %189 : vector<8x128xf32>
    %191 = arith.addf %188, %190 : vector<8x128xf32>
    %cst_71 = arith.constant 1.700000e+00 : f32
    %192 = vector.broadcast %cst_71 : f32 to vector<8x128xf32>
    %193 = arith.mulf %33, %192 : vector<8x128xf32>
    %194 = arith.addf %191, %193 : vector<8x128xf32>
    %cst_72 = arith.constant 1.600000e+00 : f32
    %195 = vector.broadcast %cst_72 : f32 to vector<8x128xf32>
    %196 = arith.mulf %38, %195 : vector<8x128xf32>
    %197 = arith.addf %194, %196 : vector<8x128xf32>
    %cst_73 = arith.constant 1.900000e+00 : f32
    %198 = vector.broadcast %cst_73 : f32 to vector<8x128xf32>
    %199 = arith.mulf %43, %198 : vector<8x128xf32>
    %200 = arith.addf %197, %199 : vector<8x128xf32>
    %201 = arith.mulf %58, %200 : vector<8x128xf32>
    %202 = arith.addf %179, %201 : vector<8x128xf32>
    %cst_74 = arith.constant 1.200000e+00 : f32
    %203 = vector.broadcast %cst_74 : f32 to vector<8x128xf32>
    %204 = arith.mulf %8, %203 : vector<8x128xf32>
    %205 = arith.addf %91, %204 : vector<8x128xf32>
    %cst_75 = arith.constant 2.000000e+00 : f32
    %206 = vector.broadcast %cst_75 : f32 to vector<8x128xf32>
    %207 = arith.mulf %13, %206 : vector<8x128xf32>
    %208 = arith.addf %205, %207 : vector<8x128xf32>
    %cst_76 = arith.constant 1.600000e+00 : f32
    %209 = vector.broadcast %cst_76 : f32 to vector<8x128xf32>
    %210 = arith.mulf %18, %209 : vector<8x128xf32>
    %211 = arith.addf %208, %210 : vector<8x128xf32>
    %cst_77 = arith.constant 1.500000e+00 : f32
    %212 = vector.broadcast %cst_77 : f32 to vector<8x128xf32>
    %213 = arith.mulf %28, %212 : vector<8x128xf32>
    %214 = arith.addf %211, %213 : vector<8x128xf32>
    %cst_78 = arith.constant 1.700000e+00 : f32
    %215 = vector.broadcast %cst_78 : f32 to vector<8x128xf32>
    %216 = arith.mulf %33, %215 : vector<8x128xf32>
    %217 = arith.addf %214, %216 : vector<8x128xf32>
    %cst_79 = arith.constant 1.800000e+00 : f32
    %218 = vector.broadcast %cst_79 : f32 to vector<8x128xf32>
    %219 = arith.mulf %38, %218 : vector<8x128xf32>
    %220 = arith.addf %217, %219 : vector<8x128xf32>
    %cst_80 = arith.constant 2.000000e+00 : f32
    %221 = vector.broadcast %cst_80 : f32 to vector<8x128xf32>
    %222 = arith.mulf %43, %221 : vector<8x128xf32>
    %223 = arith.addf %220, %222 : vector<8x128xf32>
    %224 = arith.mulf %63, %223 : vector<8x128xf32>
    %225 = arith.addf %202, %224 : vector<8x128xf32>
    %cst_81 = arith.constant 2.100000e+00 : f32
    %226 = vector.broadcast %cst_81 : f32 to vector<8x128xf32>
    %227 = arith.mulf %8, %226 : vector<8x128xf32>
    %228 = arith.addf %91, %227 : vector<8x128xf32>
    %cst_82 = arith.constant 2.600000e+00 : f32
    %229 = vector.broadcast %cst_82 : f32 to vector<8x128xf32>
    %230 = arith.mulf %13, %229 : vector<8x128xf32>
    %231 = arith.addf %228, %230 : vector<8x128xf32>
    %cst_83 = arith.constant 1.400000e+00 : f32
    %232 = vector.broadcast %cst_83 : f32 to vector<8x128xf32>
    %233 = arith.mulf %18, %232 : vector<8x128xf32>
    %234 = arith.addf %231, %233 : vector<8x128xf32>
    %cst_84 = arith.constant 2.400000e+00 : f32
    %235 = vector.broadcast %cst_84 : f32 to vector<8x128xf32>
    %236 = arith.mulf %23, %235 : vector<8x128xf32>
    %237 = arith.addf %234, %236 : vector<8x128xf32>
    %cst_85 = arith.constant 1.400000e+00 : f32
    %238 = vector.broadcast %cst_85 : f32 to vector<8x128xf32>
    %239 = arith.mulf %33, %238 : vector<8x128xf32>
    %240 = arith.addf %237, %239 : vector<8x128xf32>
    %cst_86 = arith.constant 1.500000e+00 : f32
    %241 = vector.broadcast %cst_86 : f32 to vector<8x128xf32>
    %242 = arith.mulf %38, %241 : vector<8x128xf32>
    %243 = arith.addf %240, %242 : vector<8x128xf32>
    %cst_87 = arith.constant 1.600000e+00 : f32
    %244 = vector.broadcast %cst_87 : f32 to vector<8x128xf32>
    %245 = arith.mulf %43, %244 : vector<8x128xf32>
    %246 = arith.addf %243, %245 : vector<8x128xf32>
    %247 = arith.mulf %68, %246 : vector<8x128xf32>
    %248 = arith.addf %225, %247 : vector<8x128xf32>
    %cst_88 = arith.constant 2.300000e+00 : f32
    %249 = vector.broadcast %cst_88 : f32 to vector<8x128xf32>
    %250 = arith.mulf %8, %249 : vector<8x128xf32>
    %251 = arith.addf %91, %250 : vector<8x128xf32>
    %cst_89 = arith.constant 2.500000e+00 : f32
    %252 = vector.broadcast %cst_89 : f32 to vector<8x128xf32>
    %253 = arith.mulf %13, %252 : vector<8x128xf32>
    %254 = arith.addf %251, %253 : vector<8x128xf32>
    %cst_90 = arith.constant 1.600000e+00 : f32
    %255 = vector.broadcast %cst_90 : f32 to vector<8x128xf32>
    %256 = arith.mulf %18, %255 : vector<8x128xf32>
    %257 = arith.addf %254, %256 : vector<8x128xf32>
    %cst_91 = arith.constant 2.300000e+00 : f32
    %258 = vector.broadcast %cst_91 : f32 to vector<8x128xf32>
    %259 = arith.mulf %23, %258 : vector<8x128xf32>
    %260 = arith.addf %257, %259 : vector<8x128xf32>
    %cst_92 = arith.constant 2.500000e+00 : f32
    %261 = vector.broadcast %cst_92 : f32 to vector<8x128xf32>
    %262 = arith.mulf %28, %261 : vector<8x128xf32>
    %263 = arith.addf %260, %262 : vector<8x128xf32>
    %cst_93 = arith.constant 1.400000e+00 : f32
    %264 = vector.broadcast %cst_93 : f32 to vector<8x128xf32>
    %265 = arith.mulf %38, %264 : vector<8x128xf32>
    %266 = arith.addf %263, %265 : vector<8x128xf32>
    %cst_94 = arith.constant 1.500000e+00 : f32
    %267 = vector.broadcast %cst_94 : f32 to vector<8x128xf32>
    %268 = arith.mulf %43, %267 : vector<8x128xf32>
    %269 = arith.addf %266, %268 : vector<8x128xf32>
    %270 = arith.mulf %73, %269 : vector<8x128xf32>
    %271 = arith.addf %248, %270 : vector<8x128xf32>
    %cst_95 = arith.constant 2.200000e+00 : f32
    %272 = vector.broadcast %cst_95 : f32 to vector<8x128xf32>
    %273 = arith.mulf %8, %272 : vector<8x128xf32>
    %274 = arith.addf %91, %273 : vector<8x128xf32>
    %cst_96 = arith.constant 2.800000e+00 : f32
    %275 = vector.broadcast %cst_96 : f32 to vector<8x128xf32>
    %276 = arith.mulf %13, %275 : vector<8x128xf32>
    %277 = arith.addf %274, %276 : vector<8x128xf32>
    %cst_97 = arith.constant 1.500000e+00 : f32
    %278 = vector.broadcast %cst_97 : f32 to vector<8x128xf32>
    %279 = arith.mulf %18, %278 : vector<8x128xf32>
    %280 = arith.addf %277, %279 : vector<8x128xf32>
    %cst_98 = arith.constant 2.200000e+00 : f32
    %281 = vector.broadcast %cst_98 : f32 to vector<8x128xf32>
    %282 = arith.mulf %23, %281 : vector<8x128xf32>
    %283 = arith.addf %280, %282 : vector<8x128xf32>
    %cst_99 = arith.constant 2.800000e+00 : f32
    %284 = vector.broadcast %cst_99 : f32 to vector<8x128xf32>
    %285 = arith.mulf %28, %284 : vector<8x128xf32>
    %286 = arith.addf %283, %285 : vector<8x128xf32>
    %cst_100 = arith.constant 2.200000e+00 : f32
    %287 = vector.broadcast %cst_100 : f32 to vector<8x128xf32>
    %288 = arith.mulf %33, %287 : vector<8x128xf32>
    %289 = arith.addf %286, %288 : vector<8x128xf32>
    %cst_101 = arith.constant 1.700000e+00 : f32
    %290 = vector.broadcast %cst_101 : f32 to vector<8x128xf32>
    %291 = arith.mulf %43, %290 : vector<8x128xf32>
    %292 = arith.addf %289, %291 : vector<8x128xf32>
    %293 = arith.mulf %78, %292 : vector<8x128xf32>
    %294 = arith.addf %271, %293 : vector<8x128xf32>
    %cst_102 = arith.constant 2.400000e+00 : f32
    %295 = vector.broadcast %cst_102 : f32 to vector<8x128xf32>
    %296 = arith.mulf %8, %295 : vector<8x128xf32>
    %297 = arith.addf %91, %296 : vector<8x128xf32>
    %cst_103 = arith.constant 2.900000e+00 : f32
    %298 = vector.broadcast %cst_103 : f32 to vector<8x128xf32>
    %299 = arith.mulf %13, %298 : vector<8x128xf32>
    %300 = arith.addf %297, %299 : vector<8x128xf32>
    %cst_104 = arith.constant 1.700000e+00 : f32
    %301 = vector.broadcast %cst_104 : f32 to vector<8x128xf32>
    %302 = arith.mulf %18, %301 : vector<8x128xf32>
    %303 = arith.addf %300, %302 : vector<8x128xf32>
    %cst_105 = arith.constant 2.600000e+00 : f32
    %304 = vector.broadcast %cst_105 : f32 to vector<8x128xf32>
    %305 = arith.mulf %23, %304 : vector<8x128xf32>
    %306 = arith.addf %303, %305 : vector<8x128xf32>
    %cst_106 = arith.constant 2.600000e+00 : f32
    %307 = vector.broadcast %cst_106 : f32 to vector<8x128xf32>
    %308 = arith.mulf %28, %307 : vector<8x128xf32>
    %309 = arith.addf %306, %308 : vector<8x128xf32>
    %cst_107 = arith.constant 2.300000e+00 : f32
    %310 = vector.broadcast %cst_107 : f32 to vector<8x128xf32>
    %311 = arith.mulf %33, %310 : vector<8x128xf32>
    %312 = arith.addf %309, %311 : vector<8x128xf32>
    %cst_108 = arith.constant 2.500000e+00 : f32
    %313 = vector.broadcast %cst_108 : f32 to vector<8x128xf32>
    %314 = arith.mulf %38, %313 : vector<8x128xf32>
    %315 = arith.addf %312, %314 : vector<8x128xf32>
    %316 = arith.mulf %83, %315 : vector<8x128xf32>
    %317 = arith.addf %294, %316 : vector<8x128xf32>
    %318 = arith.mulf %317, %133 : vector<8x128xf32>
    %cst_109 = arith.constant dense<0.000000e+00> : vector<128xf32>
    %319 = vector.multi_reduction <add>, %318, %cst_109 [0] : vector<8x128xf32> to vector<128xf32>
    %320 = vector.shape_cast %319 : vector<128xf32> to vector<1x128xf32>
    %cst_110 = arith.constant 0.000000e+00 : f32
    %321 = vector.broadcast %cst_110 : f32 to vector<1x128xf32>
    %322 = arith.subf %321, %320 : vector<1x128xf32>
    %c0_111 = arith.constant 0 : index
    %c0_112 = arith.constant 0 : index
    %323 = vector.load %arg2[%c0_111, %c0_112] : memref<1x128xf32, #tpu.memory_space<vmem>>, vector<1x128xf32>
    tpu.vector_store %arg2[%c0_111, %c0_112], %322 {strides = array<i32>} : memref<1x128xf32, #tpu.memory_space<vmem>>, vector<1x128xf32>,
    return
  }
  func.func @transform_0(%arg0: i32) -> (i32, i32) {
    %c0_i32 = arith.constant 0 : i32
    %c0_i32_0 = arith.constant 0 : i32
    return %c0_i32, %arg0 : i32, i32
  }
  func.func @transform_1(%arg0: i32) -> (i32, i32) {
    %c0_i32 = arith.constant 0 : i32
    %c0_i32_0 = arith.constant 0 : i32
    return %c0_i32, %arg0 : i32, i32
  }
}

</mosaic_0001>

<llo_original>
// kernel: tpu_custom_call.1
$region0: #{tpu_custom_call.1}
  #allocation0 [shape = 'u32[]', space=smem, size = 0x4, offset = 0x4, fixed_abs, tag = 'smem constant byte address 0x4 - core index']
  #allocation1 [shape = 'u32[144,128]{1,0:T(1,128)}', space=vmem, size = 0x12000, scoped, tag = 'internal scratch']
  %s0 = inlined_call_operand.hbm [shape: s32[8,256], index: 0, kind: input, shape index: {}]
  %s1 = inlined_call_operand.hbm [shape: f32[1,256], index: 1, kind: output, shape index: {}]
  %s2 = sld [smem:[#allocation0]]
  $region41: #{tpu_custom_call.1} parent=0
    _
  %s4 = ssub.s32 1, %s2
  %s5 = scalar_select 0, %s4, %s2
  $region1: #{tpu_custom_call.1} parent=0
    #allocation2 [shape = 'u8[8192]{0}', space=vmem, size = 0x2000, scoped, tag = 'input window, operand 0']
    #allocation3 [shape = 's32[2]{0}', space=sflag, size = 0x8, scoped, tag = 'scoped memory for tpu_custom_call.1']
    #allocation4 [shape = 's32[2]{0}', space=sflag, size = 0x8, scoped, tag = 'scoped memory for tpu_custom_call.1']
    #allocation5 [shape = 'u8[1024]{0}', space=vmem, size = 0x400, scoped, tag = 'output window, operand 0']
    %6 = vsyncpa [#allocation3], 0
    %s7 = scalar_lea.sflag [#allocation3], 1
    %8 = vsyncpa %s7, 0
    %9 = vsyncpa [#allocation4], 0
    %s10 = scalar_lea.sflag [#allocation4], 1
    %11 = vsyncpa %s10, 0
    loop: start=0, step=1, limit=4
    $region2: #{tpu_custom_call.1} parent=1 // loop_pre_header
      _
    $region3: #{tpu_custom_call.1} parent=1 // loop_header
      %s13 = sphi 0, %s17
      %p14 = scmp.ge.s32.totalorder %s13, 4
      %s23 = sphi 0, %s25
      %s26 = sphi 0, %s23
      %s27 = sphi 0, %s26
      %s43 = sphi 0, %s27
      %s49 = sphi 0, %s51
      %s52 = sphi 0, %s49
      %s53 = sphi 0, %s52
      %s69 = sphi 0, %s53
    $region4: #{tpu_custom_call.1} parent=1 // loop_header_branch
      %16 = sbr.rel (%p14) target = $region8
    $region5: #{tpu_custom_call.1} parent=1 // loop_body
      %s18 = ssub.s32 %s13, 1
      %s19 = ssub.s32 %s13, 2
      %s20 = sadd.s32 %s13, 1
      %s21 = ssub.s32 %s13, %s20
      %p22 = scmp.eq.s32.totalorder %s21, 0
      %s24 = sadd.s32 %s23, 1
      %s25 = scalar_select %p22, %s23, %s24
      %p28 = pneg %p22
      %p29 = scmp.eq.s32.totalorder %s13, 1
      %p30 = por %p28, %p29
      %p31 = scmp.ne.s32.totalorder %s23, %s26
      %p32 = scmp.eq.s32.totalorder %s13, 0
      %p33 = por %p31, %p32
      %p34 = scmp.ne.s32.totalorder %s23, %s26
      %p35 = scmp.eq.s32.totalorder %s18, 1
      %p36 = por %p34, %p35
      %p37 = scmp.ne.s32.totalorder %s26, %s27
      %p38 = scmp.eq.s32.totalorder %s18, 0
      %p39 = por %p37, %p38
      %p40 = scmp.ne.s32.totalorder %s26, %s27
      %p41 = scmp.eq.s32.totalorder %s19, 1
      %p42 = por %p40, %p41
      %p44 = scmp.ne.s32.totalorder %s27, %s43
      %p45 = scmp.eq.s32.totalorder %s19, 0
      %p46 = por %p44, %p45
      %s47 = ssub.s32 %s13, %s20
      %p48 = scmp.eq.s32.totalorder %s47, 0
      %s50 = sadd.s32 %s49, 1
      %s51 = scalar_select %p48, %s49, %s50
      %p54 = pneg %p48
      %p55 = scmp.eq.s32.totalorder %s13, 1
      %p56 = por %p54, %p55
      %p57 = scmp.ne.s32.totalorder %s49, %s52
      %p58 = scmp.eq.s32.totalorder %s13, 0
      %p59 = por %p57, %p58
      %p60 = scmp.ne.s32.totalorder %s49, %s52
      %p61 = scmp.eq.s32.totalorder %s18, 1
      %p62 = por %p60, %p61
      %p63 = scmp.ne.s32.totalorder %s52, %s53
      %p64 = scmp.eq.s32.totalorder %s18, 0
      %p65 = por %p63, %p64
      %p66 = scmp.ne.s32.totalorder %s52, %s53
      %p67 = scmp.eq.s32.totalorder %s19, 1
      %p68 = por %p66, %p67
      %p70 = scmp.ne.s32.totalorder %s53, %s69
      %p71 = scmp.eq.s32.totalorder %s19, 0
      %p72 = por %p70, %p71
      %p73 = scmp.le.s32.totalorder 1, %s13
      %p74 = scmp.lt.s32.totalorder %s13, 3
      %p75 = pnand %p73, %p74
      %p76 = pneg %p75
      // Predicated region
      $region9: #{tpu_custom_call.1} parent=5 // pred_check
        _
      $region10: #{tpu_custom_call.1} parent=5 // pred_check_branch
        %78 = sbr.rel (%p75) target = $region12
      $region11: #{tpu_custom_call.1} parent=5 // pred_region
        %s79 = ssub.s32 %s13, 1
      $region12: #{tpu_custom_call.1} parent=5 // pred_fallthru
        _
      %p80 = scmp.lt.s32.totalorder %s13, 2
      // Predicated region
      $region13: #{tpu_custom_call.1} parent=5 // pred_check
        %p81 = pneg %p80
      $region14: #{tpu_custom_call.1} parent=5 // pred_check_branch
        %83 = sbr.rel (%p81) target = $region16
      $region15: #{tpu_custom_call.1} parent=5 // pred_region
        // Predicated region
        $region17: #{tpu_custom_call.1} parent=15 // pred_check
          %p84 = pneg %p33
        $region18: #{tpu_custom_call.1} parent=15 // pred_check_branch
          %86 = sbr.rel (%p84) target = $region20
        $region19: #{tpu_custom_call.1} parent=15 // pred_region
          %s87 = sand.u32 %s23, 1
          %s88 = scalar_lea.sflag [#allocation3], %s87
          %s89 = sand.u32 %s23, 1
          %s90 = smul.addr %s89, 8
          %s91 = scalar_lea.vmem [#allocation2], %s90
          %s93 = ssub.s32 128, 128
          %94 = vsyncadd %s88, %s93
          %s95 = smul.addr %s13, 128
          %s96 = scalar_lea.hbm %s0, %s95
          %s98 = sshll.u32 %s91, 4
          %s99 = int_to_ptr.vmem [resolvable:$true] %s98
          %101 = dma.hbm_to_vmem [thread:$0]  %s96, 128, %s99, %s88
        $region20: #{tpu_custom_call.1} parent=15 // pred_fallthru
          _
      $region16: #{tpu_custom_call.1} parent=5 // pred_fallthru
        _
      %p102 = scmp.le.s32.totalorder 1, %s13
      %p103 = scmp.lt.s32.totalorder %s13, 3
      %p104 = pnand %p102, %p103
      %p105 = pneg %p104
      // Predicated region
      $region21: #{tpu_custom_call.1} parent=5 // pred_check
        _
      $region22: #{tpu_custom_call.1} parent=5 // pred_check_branch
        %107 = sbr.rel (%p104) target = $region24
      $region23: #{tpu_custom_call.1} parent=5 // pred_region
        %s108 = ssub.s32 %s13, 1
        %s109 = sand.u32 %s26, 1
        %s110 = scalar_lea.sflag [#allocation3], %s109
        %s111 = sand.u32 %s26, 1
        %s112 = smul.addr %s111, 8
        %s113 = scalar_lea.vmem [#allocation2], %s112
        // Predicated region
        $region25: #{tpu_custom_call.1} parent=23 // pred_check
          %p114 = pneg %p39
        $region26: #{tpu_custom_call.1} parent=23 // pred_check_branch
          %116 = sbr.rel (%p114) target = $region28
        $region27: #{tpu_custom_call.1} parent=23 // pred_region
          %117 = dma.done %s110, 128
        $region28: #{tpu_custom_call.1} parent=23 // pred_fallthru
          _
        %s118 = sand.u32 %s26, 1
        %s119 = scalar_lea.sflag [#allocation3], %s118
        %s120 = sand.u32 %s26, 1
        %s121 = smul.addr %s120, 8
        %s122 = scalar_lea.vmem [#allocation2], %s121
        %p123 = pneg %p39
        %p124 = pneg %p36
        %p125 = pneg %p65
        %p126 = pneg %p62
        %s127 = sand.u32 %s52, 1
        %s128 = scalar_lea.sflag [#allocation4], %s127
        %s129 = sand.u32 %s52, 1
        %s130 = scalar_lea.vmem [#allocation5], %s129
        %v131 = vld [vmem:[%s113] sm:$0xff]
        %v132 = vrot.slane %v131, 1
        %vm133 = vcmask 1046528
        %v134 = vsel %vm133, %v132, %v132
        %vm135 = vcmp.eq.s32.totalorder %v131, 0
        %v136 = vsel %vm135, 1.0, 0.0
        %vm137 = vcmp.eq.s32.totalorder %v131, 1
        %v138 = vsel %vm137, 1.0, 0.0
        %vm139 = vcmp.eq.s32.totalorder %v131, 2
        %v140 = vsel %vm139, 1.0, 0.0
        %vm141 = vcmp.eq.s32.totalorder %v131, 3
        %v142 = vsel %vm141, 1.0, 0.0
        %vm143 = vcmp.eq.s32.totalorder %v131, 4
        %v144 = vsel %vm143, 1.0, 0.0
        %vm145 = vcmp.eq.s32.totalorder %v131, 5
        %v146 = vsel %vm145, 1.0, 0.0
        %vm147 = vcmp.eq.s32.totalorder %v131, 6
        %v148 = vsel %vm147, 1.0, 0.0
        %vm149 = vcmp.eq.s32.totalorder %v131, 7
        %v150 = vsel %vm149, 1.0, 0.0
        %vm151 = vcmp.eq.s32.totalorder %v134, 0
        %v152 = vsel %vm151, 1.0, 0.0
        %vm153 = vcmp.eq.s32.totalorder %v134, 1
        %v154 = vsel %vm153, 1.0, 0.0
        %vm155 = vcmp.eq.s32.totalorder %v134, 2
        %v156 = vsel %vm155, 1.0, 0.0
        %vm157 = vcmp.eq.s32.totalorder %v134, 3
        %v158 = vsel %vm157, 1.0, 0.0
        %vm159 = vcmp.eq.s32.totalorder %v134, 4
        %v160 = vsel %vm159, 1.0, 0.0
        %vm161 = vcmp.eq.s32.totalorder %v134, 5
        %v162 = vsel %vm161, 1.0, 0.0
        %vm163 = vcmp.eq.s32.totalorder %v134, 6
        %v164 = vsel %vm163, 1.0, 0.0
        %vm165 = vcmp.eq.s32.totalorder %v134, 7
        %v166 = vsel %vm165, 1.0, 0.0
        %v167 = vsub.f32 %v136, %v152
        %v168 = vsub.f32 %v138, %v154
        %v169 = vsub.f32 %v140, %v156
        %v170 = vsub.f32 %v142, %v158
        %v171 = vsub.f32 %v144, %v160
        %v172 = vsub.f32 %v146, %v162
        %v173 = vsub.f32 %v148, %v164
        %v174 = vadd.f32 %v167, 0.0
        %v175 = vadd.f32 %v174, %v170
        %v176 = vadd.f32 %v175, %v172
        %v177 = vadd.f32 %v176, %v173
        %v178 = vadd.f32 %v168, 0.0
        %v179 = vadd.f32 %v178, %v170
        %v180 = vadd.f32 %v179, %v171
        %v181 = vadd.f32 %v180, %v173
        %v182 = vadd.f32 %v169, 0.0
        %v183 = vadd.f32 %v182, %v171
        %v184 = vadd.f32 %v183, %v172
        %v185 = vadd.f32 %v184, %v173
        %v186 = vmul.f32 %v177, %v177
        %v187 = vmul.f32 %v181, %v181
        %v188 = vadd.f32 %v186, %v187
        %v189 = vmul.f32 %v185, %v185
        %v190 = vadd.f32 %v188, %v189
        %v191 = vrsqrt.pop %v190
        %v192 = vmul.f32 %v190, %v191
        %vm193 = vcmp.eq.f32.partialorder %v190, inf
        %v194 = vsel %vm193, %v190, %v192
        %vm195 = vcmp.eq.f32.partialorder %v190, 0.0
        %v196 = vand.u32 %v190, 2147483648
        %v197 = vsel %vm195, %v196, %v194
        %v198 = vadd.f32 %v138, 0.0
        %v199 = vmul.f32 %v140, 1.8
        %v200 = vadd.f32 %v198, %v199
        %v201 = vmul.f32 %v142, 1.7
        %v202 = vadd.f32 %v200, %v201
        %v203 = vmul.f32 %v144, 1.9
        %v204 = vadd.f32 %v202, %v203
        %v205 = vmul.f32 %v146, 1.5
        %v206 = vadd.f32 %v204, %v205
        %v207 = vmul.f32 %v148, 1.6
        %v208 = vadd.f32 %v206, %v207
        %v209 = vmul.f32 %v150, 1.8
        %v210 = vadd.f32 %v208, %v209
        %v211 = vmul.f32 %v152, %v210
        %v212 = vadd.f32 %v211, 0.0
        %v213 = vmul.f32 %v136, 2.0
        %v214 = vadd.f32 %v213, 0.0
        %v215 = vmul.f32 %v140, 2.2
        %v216 = vadd.f32 %v214, %v215
        %v217 = vmul.f32 %v142, 1.3
        %v218 = vadd.f32 %v216, %v217
        %v219 = vmul.f32 %v144, 2.1
        %v220 = vadd.f32 %v218, %v219
        %v221 = vmul.f32 %v146, 1.9
        %v222 = vadd.f32 %v220, %v221
        %v223 = vmul.f32 %v148, 1.7
        %v224 = vadd.f32 %v222, %v223
        %v225 = vmul.f32 %v150, 1.5
        %v226 = vadd.f32 %v224, %v225
        %v227 = vmul.f32 %v154, %v226
        %v228 = vadd.f32 %v212, %v227
        %v229 = vmul.f32 %v136, 1.5
        %v230 = vadd.f32 %v229, 0.0
        %v231 = vmul.f32 %v138, 2.5
        %v232 = vadd.f32 %v230, %v231
        %v233 = vmul.f32 %v142, 1.9
        %v234 = vadd.f32 %v232, %v233
        %v235 = vmul.f32 %v144, 1.8
        %v236 = vadd.f32 %v234, %v235
        %v237 = vmul.f32 %v146, 1.7
        %v238 = vadd.f32 %v236, %v237
        %v239 = vadd.f32 %v238, %v207
        %v240 = vmul.f32 %v150, 1.9
        %v241 = vadd.f32 %v239, %v240
        %v242 = vmul.f32 %v156, %v241
        %v243 = vadd.f32 %v228, %v242
        %v244 = vmul.f32 %v136, 1.2
        %v245 = vadd.f32 %v244, 0.0
        %v246 = vmul.f32 %v138, 2.0
        %v247 = vadd.f32 %v245, %v246
        %v248 = vmul.f32 %v140, 1.6
        %v249 = vadd.f32 %v247, %v248
        %v250 = vmul.f32 %v144, 1.5
        %v251 = vadd.f32 %v249, %v250
        %v252 = vadd.f32 %v251, %v237
        %v253 = vmul.f32 %v148, 1.8
        %v254 = vadd.f32 %v252, %v253
        %v255 = vmul.f32 %v150, 2.0
        %v256 = vadd.f32 %v254, %v255
        %v257 = vmul.f32 %v158, %v256
        %v258 = vadd.f32 %v243, %v257
        %v259 = vmul.f32 %v136, 2.1
        %v260 = vadd.f32 %v259, 0.0
        %v261 = vmul.f32 %v138, 2.6
        %v262 = vadd.f32 %v260, %v261
        %v263 = vmul.f32 %v140, 1.4
        %v264 = vadd.f32 %v262, %v263
        %v265 = vmul.f32 %v142, 2.4
        %v266 = vadd.f32 %v264, %v265
        %v267 = vmul.f32 %v146, 1.4
        %v268 = vadd.f32 %v266, %v267
        %v269 = vmul.f32 %v148, 1.5
        %v270 = vadd.f32 %v268, %v269
        %v271 = vmul.f32 %v150, 1.6
        %v272 = vadd.f32 %v270, %v271
        %v273 = vmul.f32 %v160, %v272
        %v274 = vadd.f32 %v258, %v273
        %v275 = vmul.f32 %v136, 2.3
        %v276 = vadd.f32 %v275, 0.0
        %v277 = vadd.f32 %v276, %v231
        %v278 = vadd.f32 %v277, %v248
        %v279 = vmul.f32 %v142, 2.3
        %v280 = vadd.f32 %v278, %v279
        %v281 = vmul.f32 %v144, 2.5
        %v282 = vadd.f32 %v280, %v281
        %v283 = vmul.f32 %v148, 1.4
        %v284 = vadd.f32 %v282, %v283
        %v285 = vadd.f32 %v284, %v225
        %v286 = vmul.f32 %v162, %v285
        %v287 = vadd.f32 %v274, %v286
        %v288 = vmul.f32 %v136, 2.2
        %v289 = vadd.f32 %v288, 0.0
        %v290 = vmul.f32 %v138, 2.8
        %v291 = vadd.f32 %v289, %v290
        %v292 = vmul.f32 %v140, 1.5
        %v293 = vadd.f32 %v291, %v292
        %v294 = vmul.f32 %v142, 2.2
        %v295 = vadd.f32 %v293, %v294
        %v296 = vmul.f32 %v144, 2.8
        %v297 = vadd.f32 %v295, %v296
        %v298 = vmul.f32 %v146, 2.2
        %v299 = vadd.f32 %v297, %v298
        %v300 = vmul.f32 %v150, 1.7
        %v301 = vadd.f32 %v299, %v300
        %v302 = vmul.f32 %v164, %v301
        %v303 = vadd.f32 %v287, %v302
        %v304 = vmul.f32 %v136, 2.4
        %v305 = vadd.f32 %v304, 0.0
        %v306 = vmul.f32 %v138, 2.9
        %v307 = vadd.f32 %v305, %v306
        %v308 = vmul.f32 %v140, 1.7
        %v309 = vadd.f32 %v307, %v308
        %v310 = vmul.f32 %v142, 2.6
        %v311 = vadd.f32 %v309, %v310
        %v312 = vmul.f32 %v144, 2.6
        %v313 = vadd.f32 %v311, %v312
        %v314 = vmul.f32 %v146, 2.3
        %v315 = vadd.f32 %v313, %v314
        %v316 = vmul.f32 %v148, 2.5
        %v317 = vadd.f32 %v315, %v316
        %v318 = vmul.f32 %v166, %v317
        %v319 = vadd.f32 %v303, %v318
        %v320 = vmul.f32 %v319, %v197
        %v321 = vrot.slane %v320, 4
        %v322 = vadd.f32 %v320, %v321
        %v323 = vrot.slane %v322, 2
        %v324 = vadd.f32 %v322, %v323
        %v325 = vrot.slane %v324, 1
        %v326 = vadd.f32 %v324, %v325
        %v327 = vsub.f32 0.0, %v326
        %328 = vst [vmem:[%s130] sm:$0x1] %v327
        %s329 = sand.u32 %s52, 1
        %s330 = scalar_lea.sflag [#allocation4], %s329
        %s331 = sand.u32 %s52, 1
        %s332 = scalar_lea.vmem [#allocation5], %s331
        // Predicated region
        $region29: #{tpu_custom_call.1} parent=23 // pred_check
          %p333 = pneg %p62
        $region30: #{tpu_custom_call.1} parent=23 // pred_check_branch
          %335 = sbr.rel (%p333) target = $region32
        $region31: #{tpu_custom_call.1} parent=23 // pred_region
          %s337 = ssub.s32 16, 16
          %338 = vsyncadd %s330, %s337
          %s339 = smul.addr %s18, 16
          %s340 = scalar_lea.hbm %s1, %s339
          %s342 = sshll.u32 %s332, 4
          %s343 = int_to_ptr.vmem [resolvable:$true] %s342
          %345 = dma.vmem_to_hbm [thread:$0]  %s343, 16, %s340, %s330
        $region32: #{tpu_custom_call.1} parent=23 // pred_fallthru
          _
      $region24: #{tpu_custom_call.1} parent=5 // pred_fallthru
        _
      %p346 = scmp.le.s32.totalorder 2, %s13
      // Predicated region
      $region33: #{tpu_custom_call.1} parent=5 // pred_check
        %p347 = pneg %p346
      $region34: #{tpu_custom_call.1} parent=5 // pred_check_branch
        %349 = sbr.rel (%p347) target = $region36
      $region35: #{tpu_custom_call.1} parent=5 // pred_region
        %s350 = ssub.s32 %s13, 2
        // Predicated region
        $region37: #{tpu_custom_call.1} parent=35 // pred_check
          %p351 = pneg %p68
        $region38: #{tpu_custom_call.1} parent=35 // pred_check_branch
          %353 = sbr.rel (%p351) target = $region40
        $region39: #{tpu_custom_call.1} parent=35 // pred_region
          %s354 = sand.u32 %s53, 1
          %s355 = scalar_lea.sflag [#allocation4], %s354
          %s356 = sand.u32 %s53, 1
          %s357 = scalar_lea.vmem [#allocation5], %s356
          %358 = dma.done %s355, 16
        $region40: #{tpu_custom_call.1} parent=35 // pred_fallthru
          _
      $region36: #{tpu_custom_call.1} parent=5 // pred_fallthru
        _
    $region6: #{tpu_custom_call.1} parent=1 // loop_footer
      %s17 = sadd.s32 1, %s13
    $region7: #{tpu_custom_call.1} parent=1 // loop_footer_branch
      %12 = sbr.rel target = $region3
    $region8: #{tpu_custom_call.1} parent=1 // loop_exit
      _
    %359 = vsyncpa [#allocation3], 1
    %s360 = scalar_lea.sflag [#allocation3], 1
    %361 = vsyncpa %s360, 1
    %362 = vsyncpa [#allocation4], 1
    %s363 = scalar_lea.sflag [#allocation4], 1
    %364 = vsyncpa %s363, 1

</llo_original>
